<compile_context>
chip_gen: v7x
topology: tpu7x:2x2x1
jax: 0.10.0
libtpu: 0.0.40
codegen_flags: <defaults>
</compile_context>

<pallas_src>
import math

import jax
import jax.numpy as jnp
from jax import lax
from jax.experimental import pallas as pl
from jax.experimental.pallas import tpu as pltpu


def _round_up(x, m):
    return ((x + m - 1) // m) * m


def _pick_tile_s(S, C, vmem_budget_bytes=8 << 20, target_logit_bytes=2 << 20):
    """Lane-axis (point) tile: big enough to amortize per-step grid overhead
    (~1-2 MiB of logits per step), small enough that the double-buffered,
    sublane-padded VMEM footprint stays under every generation's scoped default."""
    c_pad = _round_up(C, 8)
    # double buffered f32: 2 * 4B * tile_s * (c_pad [logits] + 8 [labels padded to 8 sublanes])
    t_vmem = vmem_budget_bytes // (8 * (c_pad + 8))
    t_tgt = max(1, target_logit_bytes // (4 * C))
    t = min(t_vmem, t_tgt)
    t = max(128, (t // 128) * 128)
    if t >= S:
        return S          # full extent — always a legal block dim, no ragged tail
    return t


def _make_dice_kernel(C, S, tile_s, exponent, ignore_index):
    def kernel(x_ref, lbl_ref, num_ref, den_ref):
        s = pl.program_id(1)

        @pl.when(s == 0)
        def _init():
            num_ref[...] = jnp.zeros_like(num_ref)
            den_ref[...] = jnp.zeros_like(den_ref)

        x = x_ref[...].astype(jnp.float32)          # [C, T] logits (classes on sublanes)
        lbl = lbl_ref[...]                          # [1, T] int32 labels (lane-dense)

        # validity: in-bounds lane (the ragged last tile reads garbage past S)
        # AND label != ignore_index.  Padding rows never reach the reductions.
        pos = s * tile_s + lax.broadcasted_iota(jnp.int32, (1, tile_s), 1)
        valid = jnp.logical_and(pos < S, lbl != ignore_index)       # [1, T] bool
        validf = valid.astype(jnp.float32)

        # sanitize invalid lanes so OOB garbage bits can't produce NaN/Inf
        x = jnp.where(valid, x, 0.0)

        # softmax over the class (sublane) axis; reciprocal on the EUP slot
        m = jnp.max(x, axis=0, keepdims=True)                       # [1, T]
        e = jnp.exp(x - m)                                          # [C, T]
        p = e * pl.reciprocal(jnp.sum(e, axis=0, keepdims=True), approx=True)

        # one_hot(clamp(label, 0, C-1)), masked by validity
        cls = lax.broadcasted_iota(jnp.int32, (C, tile_s), 0)       # [C, T]
        onehot = jnp.logical_and(cls == jnp.clip(lbl, 0, C - 1), valid)
        onehot = onehot.astype(jnp.float32)                         # [C, T]

        if exponent == 1:
            p_pow = p
        elif exponent == 2:
            p_pow = p * p
        else:
            p_pow = jnp.power(p, exponent)
        # onehot ** exponent == onehot (values are exactly 0/1)

        # per-class partial sums over the lane axis -> [C, 1], accumulate into
        # the [1, C, 1] per-batch output block (resident across the s axis)
        part_num = jnp.sum(p * onehot, axis=-1, keepdims=True)
        part_den = jnp.sum(p_pow * validf + onehot, axis=-1, keepdims=True)
        num_ref[...] += part_num[None, :, :]
        den_ref[...] += part_den[None, :, :]

    return kernel


class DiceLossPallas:
    """Mirrors DiceLoss.forward from the PyTorch spec."""

    def __init__(self, smooth=1, exponent=2, loss_weight=1.0, ignore_index=255):
        self.smooth = float(smooth)
        self.exponent = exponent
        self.loss_weight = float(loss_weight)
        self.ignore_index = int(ignore_index)

    def __call__(self, pred, target):
        # pred: [N, C, *spatial] logits ; target: [N, *spatial] int labels
        N, C = int(pred.shape[0]), int(pred.shape[1])
        S = int(math.prod(pred.shape[2:]))
        # Native layout, zero-copy reshapes (no HBM transpose).
        x = pred.reshape(N, C, S)
        lbl = target.reshape(N, 1, S).astype(jnp.int32)

        # TODO(synk): torch drops ignored rows with a data-dependent gather
        # (pred[valid_mask]); here they are masked in-kernel, numerically identical.
        tile_s = _pick_tile_s(S, C)
        grid = (N, pl.cdiv(S, tile_s))

        kernel = _make_dice_kernel(C, S, tile_s, self.exponent, self.ignore_index)
        num_part, den_part = pl.pallas_call(
            kernel,
            out_shape=(jax.ShapeDtypeStruct((N, C, 1), jnp.float32),
                       jax.ShapeDtypeStruct((N, C, 1), jnp.float32)),
            grid_spec=pltpu.PrefetchScalarGridSpec(
                num_scalar_prefetch=0,
                grid=grid,
                in_specs=[
                    # [C, tile_s] logits block: classes on sublanes, points on lanes
                    pl.BlockSpec((None, C, tile_s), lambda n, s: (n, 0, s)),
                    # [1, tile_s] lane-dense labels block
                    pl.BlockSpec((None, 1, tile_s), lambda n, s: (n, 0, s)),
                ],
                out_specs=[
                    pl.BlockSpec((1, C, 1), lambda n, s: (n, 0, 0)),
                    pl.BlockSpec((1, C, 1), lambda n, s: (n, 0, 0)),
                ]),
            compiler_params=pltpu.CompilerParams(
                # batch axis across TensorCores (v7x megacore, 2x); point-tile
                # axis carries the per-class accumulators -> sequential.
                dimension_semantics=("parallel", "arbitrary")),
        )(x, lbl)

        # Tiny C-length epilogue in plain JAX (cheaper than a second kernel).
        num = num_part.reshape(N, C).sum(axis=0)                 # [C]
        den = den_part.reshape(N, C).sum(axis=0)                 # [C]
        dice = 1.0 - (2.0 * num + self.smooth) / (den + self.smooth)
        cls_idx = jnp.arange(C)
        dice = jnp.where(cls_idx != self.ignore_index, dice, 0.0)
        return (jnp.sum(dice) / C) * self.loss_weight


# ---------------------------------------------------------------------------
# Pure-JAX reference replicating the PyTorch DiceLoss.forward, for verification.
# ---------------------------------------------------------------------------
def dice_ref(pred, target, smooth=1.0, exponent=2, loss_weight=1.0,
             ignore_index=255):
    C = pred.shape[1]
    p2 = jnp.moveaxis(pred, 1, -1).reshape(-1, C)
    t = target.reshape(-1)
    valid = (t != ignore_index).astype(jnp.float32)
    probs = jax.nn.softmax(p2, axis=1)
    onehot = jax.nn.one_hot(jnp.clip(t, 0, C - 1), C, dtype=jnp.float32)
    total = jnp.float32(0.0)
    for i in range(C):
        if i == ignore_index:
            continue
        num = jnp.sum(probs[:, i] * onehot[:, i] * valid) * 2 + smooth
        den = jnp.sum((probs[:, i] ** exponent + onehot[:, i] ** exponent)
                      * valid) + smooth
        total = total + (1.0 - num / den)
    return loss_weight * total / C


if __name__ == "__main__":
    key = jax.random.PRNGKey(0)
    k1, k2, k3 = jax.random.split(key, 3)
    B, C, H, W = 2, 4, 16, 16
    pred = jax.random.normal(k1, (B, C, H, W), dtype=jnp.float32)
    target = jax.random.randint(k2, (B, H, W), 0, C, dtype=jnp.int32)
    # sprinkle some ignored pixels to exercise the ignore_index path
    target = jnp.where(jax.random.bernoulli(k3, 0.1, (B, H, W)), 255, target)

    loss_mod = DiceLossPallas(smooth=1, exponent=2, loss_weight=1.0,
                              ignore_index=255)
    loss = loss_mod(pred, target)
    loss = jax.block_until_ready(loss)

    ref = dice_ref(pred, target, smooth=1.0, exponent=2, loss_weight=1.0,
                   ignore_index=255)
    # approx (EUP) reciprocal in the softmax denominator -> allow ~1e-3 drift
    assert jnp.allclose(loss, ref, atol=1e-6, rtol=2e-3), (loss, ref)
    print("KERNEL_OK")
</pallas_src>

<mosaic_0001>
module attributes {stable_mosaic.version = 11 : i64} {
  func.func @kernel(%arg0: i32, %arg1: i32, %arg2: memref<1x4x256xf32, #tpu.memory_space<vmem>>, %arg3: memref<1x1x256xi32, #tpu.memory_space<vmem>>, %arg4: memref<1x4x1xf32, #tpu.memory_space<vmem>>, %arg5: memref<1x4x1xf32, #tpu.memory_space<vmem>>) attributes {dimension_semantics = [#tpu.dimension_semantics<parallel>, #tpu.dimension_semantics<arbitrary>], iteration_bounds = array<i64: 2, 1>, scalar_prefetch = 0 : i64, scratch_operands = 0 : i64, tpu.core_type = #tpu.core_type<tc>, window_params = [{transform_indices = @transform_0, window_bounds = array<i64: 1, 4, 256>}, {transform_indices = @transform_1, window_bounds = array<i64: 1, 1, 256>}, {transform_indices = @transform_2, window_bounds = array<i64: 1, 4, 1>}, {transform_indices = @transform_3, window_bounds = array<i64: 1, 4, 1>}]} {
    %c0_i32 = arith.constant 0 : i32
    %0 = arith.cmpi eq, %arg1, %c0_i32 : i32
    %1 = arith.extui %0 : i1 to i32
    %c0_i32_0 = arith.constant 0 : i32
    %2 = arith.cmpi ne, %1, %c0_i32_0 : i32
    scf.if %2 {
      %cst_24 = arith.constant 0.000000e+00 : f32
      %60 = vector.broadcast %cst_24 : f32 to vector<1x4x1xf32>
      %c0_25 = arith.constant 0 : index
      %c0_26 = arith.constant 0 : index
      %c0_27 = arith.constant 0 : index
      %61 = vector.load %arg4[%c0_25, %c0_26, %c0_27] : memref<1x4x1xf32, #tpu.memory_space<vmem>>, vector<1x4x1xf32>
      tpu.vector_store %arg4[%c0_25, %c0_26, %c0_27], %60 {strides = array<i32>} : memref<1x4x1xf32, #tpu.memory_space<vmem>>, vector<1x4x1xf32>,
      %cst_28 = arith.constant 0.000000e+00 : f32
      %62 = vector.broadcast %cst_28 : f32 to vector<1x4x1xf32>
      %c0_29 = arith.constant 0 : index
      %c0_30 = arith.constant 0 : index
      %c0_31 = arith.constant 0 : index
      %63 = vector.load %arg5[%c0_29, %c0_30, %c0_31] : memref<1x4x1xf32, #tpu.memory_space<vmem>>, vector<1x4x1xf32>
      tpu.vector_store %arg5[%c0_29, %c0_30, %c0_31], %62 {strides = array<i32>} : memref<1x4x1xf32, #tpu.memory_space<vmem>>, vector<1x4x1xf32>,
    } else {
    }
    %c0 = arith.constant 0 : index
    %c0_1 = arith.constant 0 : index
    %c0_2 = arith.constant 0 : index
    %3 = vector.load %arg2[%c0, %c0_1, %c0_2] : memref<1x4x256xf32, #tpu.memory_space<vmem>>, vector<1x4x256xf32>
    %4 = vector.shape_cast %3 : vector<1x4x256xf32> to vector<4x256xf32>
    %c0_3 = arith.constant 0 : index
    %c0_4 = arith.constant 0 : index
    %c0_5 = arith.constant 0 : index
    %5 = vector.load %arg3[%c0_3, %c0_4, %c0_5] : memref<1x1x256xi32, #tpu.memory_space<vmem>>, vector<1x1x256xi32>
    %6 = vector.shape_cast %5 : vector<1x1x256xi32> to vector<1x256xi32>
    %c256_i32 = arith.constant 256 : i32
    %7 = arith.muli %arg1, %c256_i32 : i32
    %8 = tpu.iota {dimensions = array<i32: 1>} : vector<1x256xi32>
    %9 = vector.broadcast %7 : i32 to vector<1x256xi32>
    %10 = arith.addi %9, %8 : vector<1x256xi32>
    %c256_i32_6 = arith.constant 256 : i32
    %11 = vector.broadcast %c256_i32_6 : i32 to vector<1x256xi32>
    %12 = arith.cmpi slt, %10, %11 : vector<1x256xi32>
    %c255_i32 = arith.constant 255 : i32
    %13 = vector.broadcast %c255_i32 : i32 to vector<1x256xi32>
    %14 = arith.cmpi ne, %6, %13 : vector<1x256xi32>
    %15 = arith.andi %12, %14 : vector<1x256xi1>
    %16 = arith.extui %15 : vector<1x256xi1> to vector<1x256xi32>
    %17 = arith.sitofp %16 : vector<1x256xi32> to vector<1x256xf32>
    %cst = arith.constant 0.000000e+00 : f32
    %18 = vector.shape_cast %15 : vector<1x256xi1> to vector<1x256xi1>
    %19 = vector.broadcast %18 : vector<1x256xi1> to vector<4x256xi1>
    %20 = vector.broadcast %cst : f32 to vector<4x256xf32>
    %21 = arith.select %19, %4, %20 : vector<4x256xi1>, vector<4x256xf32>
    %cst_7 = arith.constant dense<0xFF800000> : vector<256xf32>
    %22 = vector.multi_reduction <maximumf>, %21, %cst_7 [0] : vector<4x256xf32> to vector<256xf32>
    %23 = vector.shape_cast %22 : vector<256xf32> to vector<1x256xf32>
    %24 = vector.broadcast %23 : vector<1x256xf32> to vector<4x256xf32>
    %25 = arith.subf %21, %24 : vector<4x256xf32>
    %26 = math.exp %25 : vector<4x256xf32>
    %cst_8 = arith.constant dense<0.000000e+00> : vector<256xf32>
    %27 = vector.multi_reduction <add>, %26, %cst_8 [0] : vector<4x256xf32> to vector<256xf32>
    %28 = vector.shape_cast %27 : vector<256xf32> to vector<1x256xf32>
    %29 = tpu.reciprocal %28 {approx = true} : vector<1x256xf32> -> vector<1x256xf32>
    %30 = vector.broadcast %29 : vector<1x256xf32> to vector<4x256xf32>
    %31 = arith.mulf %26, %30 : vector<4x256xf32>
    %32 = tpu.iota {dimensions = array<i32: 0>} : vector<4x256xi32>
    %c0_i32_9 = arith.constant 0 : i32
    %c3_i32 = arith.constant 3 : i32
    %33 = vector.broadcast %c0_i32_9 : i32 to vector<1x256xi32>
    %34 = arith.maxsi %33, %6 : vector<1x256xi32>
    %35 = vector.broadcast %c3_i32 : i32 to vector<1x256xi32>
    %36 = arith.minsi %35, %34 : vector<1x256xi32>
    %37 = vector.broadcast %36 : vector<1x256xi32> to vector<4x256xi32>
    %38 = arith.cmpi eq, %32, %37 : vector<4x256xi32>
    %39 = vector.broadcast %15 : vector<1x256xi1> to vector<4x256xi1>
    %40 = arith.andi %38, %39 : vector<4x256xi1>
    %41 = arith.extui %40 : vector<4x256xi1> to vector<4x256xi32>
    %42 = arith.sitofp %41 : vector<4x256xi32> to vector<4x256xf32>
    %43 = arith.mulf %31, %31 : vector<4x256xf32>
    %44 = arith.mulf %31, %42 : vector<4x256xf32>
    %cst_10 = arith.constant dense<0.000000e+00> : vector<4xf32>
    %45 = vector.multi_reduction <add>, %44, %cst_10 [1] : vector<4x256xf32> to vector<4xf32>
    %46 = vector.shape_cast %45 : vector<4xf32> to vector<4x1xf32>
    %47 = vector.broadcast %17 : vector<1x256xf32> to vector<4x256xf32>
    %48 = arith.mulf %43, %47 : vector<4x256xf32>
    %49 = arith.addf %48, %42 : vector<4x256xf32>
    %cst_11 = arith.constant dense<0.000000e+00> : vector<4xf32>
    %50 = vector.multi_reduction <add>, %49, %cst_11 [1] : vector<4x256xf32> to vector<4xf32>
    %51 = vector.shape_cast %50 : vector<4xf32> to vector<4x1xf32>
    %c0_12 = arith.constant 0 : index
    %c0_13 = arith.constant 0 : index
    %c0_14 = arith.constant 0 : index
    %52 = vector.load %arg4[%c0_12, %c0_13, %c0_14] : memref<1x4x1xf32, #tpu.memory_space<vmem>>, vector<1x4x1xf32>
    %53 = vector.shape_cast %46 : vector<4x1xf32> to vector<1x4x1xf32>
    %54 = arith.addf %52, %53 : vector<1x4x1xf32>
    %c0_15 = arith.constant 0 : index
    %c0_16 = arith.constant 0 : index
    %c0_17 = arith.constant 0 : index
    %55 = vector.load %arg4[%c0_15, %c0_16, %c0_17] : memref<1x4x1xf32, #tpu.memory_space<vmem>>, vector<1x4x1xf32>
    tpu.vector_store %arg4[%c0_15, %c0_16, %c0_17], %54 {strides = array<i32>} : memref<1x4x1xf32, #tpu.memory_space<vmem>>, vector<1x4x1xf32>,
    %c0_18 = arith.constant 0 : index
    %c0_19 = arith.constant 0 : index
    %c0_20 = arith.constant 0 : index
    %56 = vector.load %arg5[%c0_18, %c0_19, %c0_20] : memref<1x4x1xf32, #tpu.memory_space<vmem>>, vector<1x4x1xf32>
    %57 = vector.shape_cast %51 : vector<4x1xf32> to vector<1x4x1xf32>
    %58 = arith.addf %56, %57 : vector<1x4x1xf32>
    %c0_21 = arith.constant 0 : index
    %c0_22 = arith.constant 0 : index
    %c0_23 = arith.constant 0 : index
    %59 = vector.load %arg5[%c0_21, %c0_22, %c0_23] : memref<1x4x1xf32, #tpu.memory_space<vmem>>, vector<1x4x1xf32>
    tpu.vector_store %arg5[%c0_21, %c0_22, %c0_23], %58 {strides = array<i32>} : memref<1x4x1xf32, #tpu.memory_space<vmem>>, vector<1x4x1xf32>,
    return
  }
  func.func @transform_0(%arg0: i32, %arg1: i32) -> (i32, i32, i32) {
    %c0_i32 = arith.constant 0 : i32
    %c0_i32_0 = arith.constant 0 : i32
    return %arg0, %c0_i32, %arg1 : i32, i32, i32
  }
  func.func @transform_1(%arg0: i32, %arg1: i32) -> (i32, i32, i32) {
    %c0_i32 = arith.constant 0 : i32
    %c0_i32_0 = arith.constant 0 : i32
    return %arg0, %c0_i32, %arg1 : i32, i32, i32
  }
  func.func @transform_2(%arg0: i32, %arg1: i32) -> (i32, i32, i32) {
    %c0_i32 = arith.constant 0 : i32
    %c0_i32_0 = arith.constant 0 : i32
    %c0_i32_1 = arith.constant 0 : i32
    return %arg0, %c0_i32, %c0_i32_0 : i32, i32, i32
  }
  func.func @transform_3(%arg0: i32, %arg1: i32) -> (i32, i32, i32) {
    %c0_i32 = arith.constant 0 : i32
    %c0_i32_0 = arith.constant 0 : i32
    %c0_i32_1 = arith.constant 0 : i32
    return %arg0, %c0_i32, %c0_i32_0 : i32, i32, i32
  }
}

</mosaic_0001>

<llo_original>
// kernel: tpu_custom_call.1
$region0: #{tpu_custom_call.1}
  #allocation0 [shape = 'u32[]', space=smem, size = 0x4, offset = 0x4, fixed_abs, tag = 'smem constant byte address 0x4 - core index']
  #allocation1 [shape = 'u32[144,128]{1,0:T(1,128)}', space=vmem, size = 0x12000, scoped, tag = 'internal scratch']
  %s0 = inlined_call_operand.hbm [shape: f32[2,4,256], index: 0, kind: input, shape index: {}]
  %s1 = inlined_call_operand.hbm [shape: s32[2,1,256], index: 1, kind: input, shape index: {}]
  %s2 = inlined_call_operand.vmem [shape: f32[2,4,1], index: 2, kind: output, shape index: {0}]
  %s3 = inlined_call_operand.vmem [shape: f32[2,4,1], index: 3, kind: output, shape index: {1}]
  %4 = xla_tuple %s2, %s3
  %s5 = sld [smem:[#allocation0]]
  $region61: #{tpu_custom_call.1} parent=0
    _
  %s7 = ssub.s32 1, %s5
  %s8 = scalar_select 0, %s7, %s5
  $region1: #{tpu_custom_call.1} parent=0
    #allocation2 [shape = 'u8[8192]{0}', space=vmem, size = 0x2000, scoped, tag = 'input window, operand 0']
    #allocation3 [shape = 's32[2]{0}', space=sflag, size = 0x8, scoped, tag = 'scoped memory for tpu_custom_call.1']
    #allocation4 [shape = 'u8[2048]{0}', space=vmem, size = 0x800, scoped, tag = 'input window, operand 1']
    #allocation5 [shape = 's32[2]{0}', space=sflag, size = 0x8, scoped, tag = 'scoped memory for tpu_custom_call.1']
    %9 = vsyncpa [#allocation3], 0
    %s10 = scalar_lea.sflag [#allocation3], 1
    %11 = vsyncpa %s10, 0
    %12 = vsyncpa [#allocation5], 0
    %s13 = scalar_lea.sflag [#allocation5], 1
    %14 = vsyncpa %s13, 0
    loop: start=0, step=1, limit=4
    $region2: #{tpu_custom_call.1} parent=1 // loop_pre_header
      _
    $region3: #{tpu_custom_call.1} parent=1 // loop_header
      %s16 = sphi 0, %s20
      %p17 = scmp.ge.s32.totalorder %s16, 4
      %s23 = sphi 0, %s35
      %s24 = sphi 0, %s31
      %s25 = sphi 0, %s23
      %s26 = sphi 0, %s24
      %s27 = sphi 0, %s25
      %s28 = sphi 0, %s26
      %s40 = sphi 0, %s42
      %s43 = sphi 0, %s40
      %s44 = sphi 0, %s43
      %s60 = sphi 0, %s44
      %s68 = sphi 0, %s70
      %s71 = sphi 0, %s68
      %s72 = sphi 0, %s71
      %s88 = sphi 0, %s72
      %s94 = sphi 0, %s96
      %s97 = sphi 0, %s94
      %s98 = sphi 0, %s97
      %s114 = sphi 0, %s98
      %s120 = sphi 0, %s122
      %s123 = sphi 0, %s120
      %s124 = sphi 0, %s123
      %s140 = sphi 0, %s124
    $region4: #{tpu_custom_call.1} parent=1 // loop_header_branch
      %19 = sbr.rel (%p17) target = $region8
    $region5: #{tpu_custom_call.1} parent=1 // loop_body
      %s21 = ssub.s32 %s16, 1
      %s22 = ssub.s32 %s16, 2
      %s29 = sadd.s32 1, %s24
      %p30 = scmp.ge.s32.totalorder %s29, 1
      %s31 = scalar_select %p30, 0, %s29
      %s32 = sadd.s32 1, %s23
      %s33 = scalar_select %p30, %s32, %s23
      %p34 = scmp.ge.s32.totalorder %s33, 2
      %s35 = scalar_select %p34, 0, %s33
      %s36 = ssub.s32 %s23, %s35
      %s37 = ssub.s32 %s24, %s31
      %s38 = sor.u32 %s36, %s37
      %p39 = scmp.eq.s32.totalorder %s38, 0
      %s41 = sadd.s32 %s40, 1
      %s42 = scalar_select %p39, %s40, %s41
      %p45 = pneg %p39
      %p46 = scmp.eq.s32.totalorder %s16, 1
      %p47 = por %p45, %p46
      %p48 = scmp.ne.s32.totalorder %s40, %s43
      %p49 = scmp.eq.s32.totalorder %s16, 0
      %p50 = por %p48, %p49
      %p51 = scmp.ne.s32.totalorder %s40, %s43
      %p52 = scmp.eq.s32.totalorder %s21, 1
      %p53 = por %p51, %p52
      %p54 = scmp.ne.s32.totalorder %s43, %s44
      %p55 = scmp.eq.s32.totalorder %s21, 0
      %p56 = por %p54, %p55
      %p57 = scmp.ne.s32.totalorder %s43, %s44
      %p58 = scmp.eq.s32.totalorder %s22, 1
      %p59 = por %p57, %p58
      %p61 = scmp.ne.s32.totalorder %s44, %s60
      %p62 = scmp.eq.s32.totalorder %s22, 0
      %p63 = por %p61, %p62
      %s64 = ssub.s32 %s23, %s35
      %s65 = ssub.s32 %s24, %s31
      %s66 = sor.u32 %s64, %s65
      %p67 = scmp.eq.s32.totalorder %s66, 0
      %s69 = sadd.s32 %s68, 1
      %s70 = scalar_select %p67, %s68, %s69
      %p73 = pneg %p67
      %p74 = scmp.eq.s32.totalorder %s16, 1
      %p75 = por %p73, %p74
      %p76 = scmp.ne.s32.totalorder %s68, %s71
      %p77 = scmp.eq.s32.totalorder %s16, 0
      %p78 = por %p76, %p77
      %p79 = scmp.ne.s32.totalorder %s68, %s71
      %p80 = scmp.eq.s32.totalorder %s21, 1
      %p81 = por %p79, %p80
      %p82 = scmp.ne.s32.totalorder %s71, %s72
      %p83 = scmp.eq.s32.totalorder %s21, 0
      %p84 = por %p82, %p83
      %p85 = scmp.ne.s32.totalorder %s71, %s72
      %p86 = scmp.eq.s32.totalorder %s22, 1
      %p87 = por %p85, %p86
      %p89 = scmp.ne.s32.totalorder %s72, %s88
      %p90 = scmp.eq.s32.totalorder %s22, 0
      %p91 = por %p89, %p90
      %s92 = ssub.s32 %s23, %s35
      %p93 = scmp.eq.s32.totalorder %s92, 0
      %s95 = sadd.s32 %s94, 1
      %s96 = scalar_select %p93, %s94, %s95
      %p99 = pneg %p93
      %p100 = scmp.eq.s32.totalorder %s16, 1
      %p101 = por %p99, %p100
      %p102 = scmp.ne.s32.totalorder %s94, %s97
      %p103 = scmp.eq.s32.totalorder %s16, 0
      %p104 = por %p102, %p103
      %p105 = scmp.ne.s32.totalorder %s94, %s97
      %p106 = scmp.eq.s32.totalorder %s21, 1
      %p107 = por %p105, %p106
      %p108 = scmp.ne.s32.totalorder %s97, %s98
      %p109 = scmp.eq.s32.totalorder %s21, 0
      %p110 = por %p108, %p109
      %p111 = scmp.ne.s32.totalorder %s97, %s98
      %p112 = scmp.eq.s32.totalorder %s22, 1
      %p113 = por %p111, %p112
      %p115 = scmp.ne.s32.totalorder %s98, %s114
      %p116 = scmp.eq.s32.totalorder %s22, 0
      %p117 = por %p115, %p116
      %s118 = ssub.s32 %s23, %s35
      %p119 = scmp.eq.s32.totalorder %s118, 0
      %s121 = sadd.s32 %s120, 1
      %s122 = scalar_select %p119, %s120, %s121
      %p125 = pneg %p119
      %p126 = scmp.eq.s32.totalorder %s16, 1
      %p127 = por %p125, %p126
      %p128 = scmp.ne.s32.totalorder %s120, %s123
      %p129 = scmp.eq.s32.totalorder %s16, 0
      %p130 = por %p128, %p129
      %p131 = scmp.ne.s32.totalorder %s120, %s123
      %p132 = scmp.eq.s32.totalorder %s21, 1
      %p133 = por %p131, %p132
      %p134 = scmp.ne.s32.totalorder %s123, %s124
      %p135 = scmp.eq.s32.totalorder %s21, 0
      %p136 = por %p134, %p135
      %p137 = scmp.ne.s32.totalorder %s123, %s124
      %p138 = scmp.eq.s32.totalorder %s22, 1
      %p139 = por %p137, %p138
      %p141 = scmp.ne.s32.totalorder %s124, %s140
      %p142 = scmp.eq.s32.totalorder %s22, 0
      %p143 = por %p141, %p142
      %p144 = scmp.le.s32.totalorder 1, %s16
      %p145 = scmp.lt.s32.totalorder %s16, 3
      %p146 = pnand %p144, %p145
      %p147 = pneg %p146
      // Predicated region
      $region9: #{tpu_custom_call.1} parent=5 // pred_check
        _
      $region10: #{tpu_custom_call.1} parent=5 // pred_check_branch
        %149 = sbr.rel (%p146) target = $region12
      $region11: #{tpu_custom_call.1} parent=5 // pred_region
        %s150 = ssub.s32 %s16, 1
      $region12: #{tpu_custom_call.1} parent=5 // pred_fallthru
        _
      %p151 = scmp.lt.s32.totalorder %s16, 2
      // Predicated region
      $region13: #{tpu_custom_call.1} parent=5 // pred_check
        %p152 = pneg %p151
      $region14: #{tpu_custom_call.1} parent=5 // pred_check_branch
        %154 = sbr.rel (%p152) target = $region16
      $region15: #{tpu_custom_call.1} parent=5 // pred_region
        // Predicated region
        $region17: #{tpu_custom_call.1} parent=15 // pred_check
          %p155 = pneg %p50
        $region18: #{tpu_custom_call.1} parent=15 // pred_check_branch
          %157 = sbr.rel (%p155) target = $region20
        $region19: #{tpu_custom_call.1} parent=15 // pred_region
          %s158 = sand.u32 %s40, 1
          %s159 = scalar_lea.sflag [#allocation3], %s158
          %s160 = sand.u32 %s40, 1
          %s161 = smul.addr %s160, 8
          %s162 = scalar_lea.vmem [#allocation2], %s161
          %s163 = smul.u32 2, %s24
          %s165 = ssub.s32 128, 128
          %166 = vsyncadd %s159, %s165
          %s167 = smul.addr %s23, 2
          %s168 = sadd.s32 %s163, %s167
          %s169 = smul.addr %s168, 64
          %s170 = scalar_lea.hbm %s0, %s169
          %s172 = sshll.u32 %s162, 4
          %s173 = int_to_ptr.vmem [resolvable:$true] %s172
          %175 = dma.hbm_to_vmem [thread:$0]  %s170, 128, %s173, %s159
        $region20: #{tpu_custom_call.1} parent=15 // pred_fallthru
          _
        // Predicated region
        $region21: #{tpu_custom_call.1} parent=15 // pred_check
          %p176 = pneg %p78
        $region22: #{tpu_custom_call.1} parent=15 // pred_check_branch
          %178 = sbr.rel (%p176) target = $region24
        $region23: #{tpu_custom_call.1} parent=15 // pred_region
          %s179 = sand.u32 %s68, 1
          %s180 = scalar_lea.sflag [#allocation5], %s179
          %s181 = sand.u32 %s68, 1
          %s182 = smul.addr %s181, 2
          %s183 = scalar_lea.vmem [#allocation4], %s182
          %s184 = smul.u32 2, %s24
          %s186 = ssub.s32 32, 32
          %187 = vsyncadd %s180, %s186
          %s188 = smul.addr %s23, 2
          %s189 = sadd.s32 %s184, %s188
          %s190 = smul.addr %s189, 16
          %s191 = scalar_lea.hbm %s1, %s190
          %s193 = sshll.u32 %s183, 4
          %s194 = int_to_ptr.vmem [resolvable:$true] %s193
          %196 = dma.hbm_to_vmem [thread:$0]  %s191, 32, %s194, %s180
        $region24: #{tpu_custom_call.1} parent=15 // pred_fallthru
          _
      $region16: #{tpu_custom_call.1} parent=5 // pred_fallthru
        _
      %p197 = scmp.le.s32.totalorder 1, %s16
      %p198 = scmp.lt.s32.totalorder %s16, 3
      %p199 = pnand %p197, %p198
      %p200 = pneg %p199
      // Predicated region
      $region25: #{tpu_custom_call.1} parent=5 // pred_check
        _
      $region26: #{tpu_custom_call.1} parent=5 // pred_check_branch
        %202 = sbr.rel (%p199) target = $region28
      $region27: #{tpu_custom_call.1} parent=5 // pred_region
        %s203 = ssub.s32 %s16, 1
        %s204 = sand.u32 %s43, 1
        %s205 = scalar_lea.sflag [#allocation3], %s204
        %s206 = sand.u32 %s43, 1
        %s207 = smul.addr %s206, 8
        %s208 = scalar_lea.vmem [#allocation2], %s207
        // Predicated region
        $region29: #{tpu_custom_call.1} parent=27 // pred_check
          %p209 = pneg %p56
        $region30: #{tpu_custom_call.1} parent=27 // pred_check_branch
          %211 = sbr.rel (%p209) target = $region32
        $region31: #{tpu_custom_call.1} parent=27 // pred_region
          %212 = dma.done %s205, 128
        $region32: #{tpu_custom_call.1} parent=27 // pred_fallthru
          _
        %s213 = sand.u32 %s71, 1
        %s214 = scalar_lea.sflag [#allocation5], %s213
        %s215 = sand.u32 %s71, 1
        %s216 = smul.addr %s215, 2
        %s217 = scalar_lea.vmem [#allocation4], %s216
        // Predicated region
        $region33: #{tpu_custom_call.1} parent=27 // pred_check
          %p218 = pneg %p84
        $region34: #{tpu_custom_call.1} parent=27 // pred_check_branch
          %220 = sbr.rel (%p218) target = $region36
        $region35: #{tpu_custom_call.1} parent=27 // pred_region
          %221 = dma.done %s214, 32
        $region36: #{tpu_custom_call.1} parent=27 // pred_fallthru
          _
        %s222 = sand.u32 %s43, 1
        %s223 = scalar_lea.sflag [#allocation3], %s222
        %s224 = sand.u32 %s43, 1
        %s225 = smul.addr %s224, 8
        %s226 = scalar_lea.vmem [#allocation2], %s225
        %p227 = pneg %p56
        %p228 = pneg %p53
        %s229 = sand.u32 %s71, 1
        %s230 = scalar_lea.sflag [#allocation5], %s229
        %s231 = sand.u32 %s71, 1
        %s232 = smul.addr %s231, 2
        %s233 = scalar_lea.vmem [#allocation4], %s232
        %p234 = pneg %p84
        %p235 = pneg %p81
        %p236 = pneg %p110
        %p237 = pneg %p107
        %p238 = scmp.lt.s32.totalorder %s25, 1
        %s239 = scalar_select %p238, %s25, 1
        %s240 = smul.addr %s239, 4
        %s241 = scalar_lea.vmem %s2, %s240
        %p242 = pneg %p136
        %p243 = pneg %p133
        %p244 = scmp.lt.s32.totalorder %s25, 1
        %s245 = scalar_select %p244, %s25, 1
        %s246 = smul.addr %s245, 4
        %s247 = scalar_lea.vmem %s3, %s246
        %s248 = smul.u32 2, %s26
        %s249 = smul.u32 2, %s26
        %p250 = scmp.lt.s32.totalorder %s25, 1
        %s251 = scalar_select %p250, %s25, 1
        %s252 = smul.addr %s251, 4
        %s253 = scalar_lea.vmem %s2, %s252
        %p254 = scmp.lt.s32.totalorder %s25, 1
        %s255 = scalar_select %p254, %s25, 1
        %s256 = smul.addr %s255, 4
        %s257 = scalar_lea.vmem %s3, %s256
        %p258 = scmp.eq.s32.totalorder %s26, 0
        // Predicated region
        $region37: #{tpu_custom_call.1} parent=27 // pred_check
          %p259 = pneg %p258
        $region38: #{tpu_custom_call.1} parent=27 // pred_check_branch
          %261 = sbr.rel (%p259) target = $region40
        $region39: #{tpu_custom_call.1} parent=27 // pred_region
          %vm262 = vcmask 3072
          %263 = vst.msk [vmem:[%s253] sm:$0xf] %vm262, 0.0
          %264 = vst.msk [vmem:[%s257] sm:$0xf] %vm262, 0.0
        $region40: #{tpu_custom_call.1} parent=27 // pred_fallthru
          _
        %v265 = vld [vmem:[%s208] sm:$0xff]
        %v266 = vld [vmem:[%s217] sm:$0x3]
        %s267 = smul.u32 %s26, 256
        %v268 = vlaneseq
        %v269 = vand.u32 %v268, 127
        %v270 = vadd.s32 %v269, 128
        %v271 = vstv %s267
        %v272 = vadd.s32 %v271, %v269
        %v273 = vadd.s32 %v271, %v270
        %vm274 = vcmp.lt.s32.totalorder %v272, 256
        %vm275 = vcmp.lt.s32.totalorder %v273, 256
        %vm276 = vcmp.ne.s32.totalorder %v266, 255
        %v277 = vsel %vm276, 1, 0
        %v278 = vlaneseq
        %v279 = vshrl.u32 %v278, 7
        %v280 = vsub.s32 0, %v279
        %v281 = vrot.slane %v277, %v280
        %v282 = vlaneseq
        %v283 = vshrl.u32 %v282, 7
        %v284 = vsub.s32 1, %v283
        %v285 = vrot.slane %v277, %v284
        %vm286 = vcmp.ne.s32.totalorder %v281, 0
        %vm287 = vcmp.ne.s32.totalorder %v285, 0
        %vm288 = vmand %vm274, %vm286
        %vm289 = vmand %vm275, %vm287
        %v290 = vsel %vm288, 1, 0
        %v291 = vsel %vm289, 1, 0
        %v292 = vcvt.s32.f32 %v290
        %v293 = vcvt.s32.f32 %v291
        %v294 = vlaneseq
        %v295 = vshrl.u32 %v294, 7
        %v296 = vsub.s32 0, %v295
        %v297 = vrot.slane %v290, %v296
        %v298 = vlaneseq
        %v299 = vshrl.u32 %v298, 7
        %v300 = vsub.s32 0, %v299
        %v301 = vrot.slane %v291, %v300
        %vm302 = vcmp.eq.s32.totalorder %v297, 1
        %vm303 = vcmp.eq.s32.totalorder %v301, 1
        %v305 = vcombine.high %v265, %v265
        %v307 = vsel %vm302, %v265, 0.0
        %v308 = vsel %vm303, %v305, 0.0
        %vm309 = vcmask 1043456
        %v310 = vsel %vm309, %v307, -inf
        %v311 = vrot.slane %v310, 4
        %v312 = vmax.f32 %v310, %v311
        %v313 = vrot.slane %v312, 2
        %v314 = vmax.f32 %v312, %v313
        %v315 = vrot.slane %v314, 1
        %v316 = vmax.f32 %v314, %v315
        %v317 = vsel %vm309, %v308, -inf
        %v318 = vrot.slane %v317, 4
        %v319 = vmax.f32 %v317, %v318
        %v320 = vrot.slane %v319, 2
        %v321 = vmax.f32 %v319, %v320
        %v322 = vrot.slane %v321, 1
        %v323 = vmax.f32 %v321, %v322
        %v324 = vsub.f32 %v307, %v316
        %v325 = vsub.f32 %v308, %v323
        %v326 = vmul.f32 %v324, 1.442695
        %v327 = vpow.pop %v326
        %v328 = vmul.f32 %v325, 1.442695
        %v329 = vpow.pop %v328
        %v330 = vsel %vm309, %v327, 0.0
        %v331 = vrot.slane %v330, 4
        %v332 = vadd.f32 %v330, %v331
        %v333 = vrot.slane %v332, 2
        %v334 = vadd.f32 %v332, %v333
        %v335 = vrot.slane %v334, 1
        %v336 = vadd.f32 %v334, %v335
        %v337 = vsel %vm309, %v329, 0.0
        %v338 = vrot.slane %v337, 4
        %v339 = vadd.f32 %v337, %v338
        %v340 = vrot.slane %v339, 2
        %v341 = vadd.f32 %v339, %v340
        %v342 = vrot.slane %v341, 1
        %v343 = vadd.f32 %v341, %v342
        %v344 = vrcp.pop %v336
        %v345 = vrcp.pop %v343
        %v346 = vmul.f32 %v327, %v344
        %v347 = vmul.f32 %v329, %v345
        %v348 = vlaneseq
        %v349 = vshrl.u32 %v348, 7
        %vm350 = vcmp.gt.s32.totalorder %v266, 0
        %v351 = vsel %vm350, %v266, 0
        %vm352 = vcmp.lt.s32.totalorder %v351, 3
        %v353 = vsel %vm352, %v351, 3
        %v354 = vlaneseq
        %v355 = vshrl.u32 %v354, 7
        %v356 = vsub.s32 0, %v355
        %v357 = vrot.slane %v353, %v356
        %v358 = vlaneseq
        %v359 = vshrl.u32 %v358, 7
        %v360 = vsub.s32 1, %v359
        %v361 = vrot.slane %v353, %v360
        %vm362 = vcmp.eq.s32.totalorder %v349, %v357
        %vm363 = vcmp.eq.s32.totalorder %v349, %v361
        %vm364 = vmand %vm362, %vm302
        %vm365 = vmand %vm363, %vm303
        %v366 = vsel %vm364, 1, 0
        %v367 = vsel %vm365, 1, 0
        %v368 = vcvt.s32.f32 %v366
        %v369 = vcvt.s32.f32 %v367
        %v370 = vmul.f32 %v346, %v346
        %v371 = vmul.f32 %v347, %v347
        %v372 = vmul.f32 %v346, %v368
        %v373 = vmul.f32 %v347, %v369
        %v374 = vsel %vm309, %v372, 0.0
        %v375 = vsel %vm309, %v373, 0.0
        %v376 = vadd.f32 %v374, %v375
        %377 = vadd.xlane.f32.xlu0 %v376
        %v378 = vpop.xlane.xlu0 %377
        %v379 = vlaneseq
        %v380 = vshrl.u32 %v379, 7
        %v381 = vsub.s32 0, %v380
        %v382 = vrot.slane %v292, %v381
        %v383 = vlaneseq
        %v384 = vshrl.u32 %v383, 7
        %v385 = vsub.s32 0, %v384
        %v386 = vrot.slane %v293, %v385
        %v387 = vmul.f32 %v370, %v382
        %v388 = vmul.f32 %v371, %v386
        %v389 = vadd.f32 %v387, %v368
        %v390 = vadd.f32 %v388, %v369
        %v391 = vsel %vm309, %v389, 0.0
        %v392 = vsel %vm309, %v390, 0.0
        %v393 = vadd.f32 %v391, %v392
        %394 = vadd.xlane.f32.xlu0 %v393
        %v395 = vpop.xlane.xlu0 %394
        %v396 = vld [vmem:[%s253] sm:$0xf]
        %v397 = vadd.f32 %v396, %v378
        %vm398 = vcmask 3072
        %399 = vst.msk [vmem:[%s253] sm:$0xf] %vm398, %v397
        %v400 = vld [vmem:[%s257] sm:$0xf]
        %v401 = vadd.f32 %v400, %v395
        %402 = vst.msk [vmem:[%s257] sm:$0xf] %vm398, %v401
        %p403 = scmp.lt.s32.totalorder %s25, 1
        %s404 = scalar_select %p403, %s25, 1
        %s405 = smul.addr %s404, 4
        %s406 = scalar_lea.vmem %s2, %s405
        %p407 = scmp.lt.s32.totalorder %s25, 1
        %s408 = scalar_select %p407, %s25, 1
        %s409 = smul.addr %s408, 4
        %s410 = scalar_lea.vmem %s3, %s409
        // Predicated region
        $region41: #{tpu_custom_call.1} parent=27 // pred_check
          %p411 = pneg %p107
        $region42: #{tpu_custom_call.1} parent=27 // pred_check_branch
          %413 = sbr.rel (%p411) target = $region44
        $region43: #{tpu_custom_call.1} parent=27 // pred_region
          _
        $region44: #{tpu_custom_call.1} parent=27 // pred_fallthru
          _
        // Predicated region
        $region45: #{tpu_custom_call.1} parent=27 // pred_check
          %p414 = pneg %p133
        $region46: #{tpu_custom_call.1} parent=27 // pred_check_branch
          %416 = sbr.rel (%p414) target = $region48
        $region47: #{tpu_custom_call.1} parent=27 // pred_region
          _
        $region48: #{tpu_custom_call.1} parent=27 // pred_fallthru
          _
      $region28: #{tpu_custom_call.1} parent=5 // pred_fallthru
        _
      %p417 = scmp.le.s32.totalorder 2, %s16
      // Predicated region
      $region49: #{tpu_custom_call.1} parent=5 // pred_check
        %p418 = pneg %p417
      $region50: #{tpu_custom_call.1} parent=5 // pred_check_branch
        %420 = sbr.rel (%p418) target = $region52
      $region51: #{tpu_custom_call.1} parent=5 // pred_region
        %s421 = ssub.s32 %s16, 2
        // Predicated region
        $region53: #{tpu_custom_call.1} parent=51 // pred_check
          %p422 = pneg %p113
        $region54: #{tpu_custom_call.1} parent=51 // pred_check_branch
          %424 = sbr.rel (%p422) target = $region56
        $region55: #{tpu_custom_call.1} parent=51 // pred_region
          %p425 = scmp.lt.s32.totalorder %s27, 1
          %s426 = scalar_select %p425, %s27, 1
          %s427 = smul.addr %s426, 4
          %s428 = scalar_lea.vmem %s2, %s427
        $region56: #{tpu_custom_call.1} parent=51 // pred_fallthru
          _
        // Predicated region
        $region57: #{tpu_custom_call.1} parent=51 // pred_check
          %p429 = pneg %p139
        $region58: #{tpu_custom_call.1} parent=51 // pred_check_branch
          %431 = sbr.rel (%p429) target = $region60
        $region59: #{tpu_custom_call.1} parent=51 // pred_region
          %p432 = scmp.lt.s32.totalorder %s27, 1
          %s433 = scalar_select %p432, %s27, 1
          %s434 = smul.addr %s433, 4
          %s435 = scalar_lea.vmem %s3, %s434
        $region60: #{tpu_custom_call.1} parent=51 // pred_fallthru
          _
      $region52: #{tpu_custom_call.1} parent=5 // pred_fallthru
        _
    $region6: #{tpu_custom_call.1} parent=1 // loop_footer
      %s20 = sadd.s32 1, %s16
    $region7: #{tpu_custom_call.1} parent=1 // loop_footer_branch
      %15 = sbr.rel target = $region3
    $region8: #{tpu_custom_call.1} parent=1 // loop_exit
      _
    %436 = vsyncpa [#allocation3], 1
    %s437 = scalar_lea.sflag [#allocation3], 1
    %438 = vsyncpa %s437, 1
    %439 = vsyncpa [#allocation5], 1
    %s440 = scalar_lea.sflag [#allocation5], 1
    %441 = vsyncpa %s440, 1

</llo_original>
